<compile_context>
chip_gen: v7x
topology: tpu7x:2x2x1
jax: 0.10.0
libtpu: 0.0.40
codegen_flags: <defaults>
</compile_context>

<pallas_src>
import functools

import jax
import jax.numpy as jnp
from jax import lax
from jax.experimental import pallas as pl
from jax.experimental.pallas import tpu as pltpu


def _round_up(x: int, m: int) -> int:
    return (x + m - 1) // m * m


def policy_net_kernel(obs_ref, w1_ref, b1_ref, w2_ref, b2_ref,
                      wh_ref, bh_ref, out_ref, *, act_dim: int, head_rows: int):
    """One batch tile of the full forward pass, writing a transposed head slab.

    shared_net: Linear -> Tanh -> Linear -> Tanh
    fused head: one lane-padded matmul producing [mean | std_linear | pad];
                transposed to [head_rows, TB] before the (stable) softplus and
                the HBM writeback, so only the real head rows leave VMEM.
    """
    x = obs_ref[...]

    # Hidden layer 1: tanh(x @ W1 + b1)   (f32 accumulate, f32 VPU/EUP math)
    h1 = jnp.tanh(
        jnp.dot(x, w1_ref[...], preferred_element_type=jnp.float32)
        + b1_ref[...]
    )
    h1 = h1.astype(w2_ref.dtype)

    # Hidden layer 2: tanh(h1 @ W2 + b2)
    h2 = jnp.tanh(
        jnp.dot(h1, w2_ref[...], preferred_element_type=jnp.float32)
        + b2_ref[...]
    )

    # Fused mean|std head, lane-padded to P (=128): [TB, P], all-f32 matmul
    # (cost is negligible; keeps head numerics at f32 accuracy).
    head = (
        jnp.dot(h2, wh_ref[...], preferred_element_type=jnp.float32)
        + bh_ref[...]
    )

    # Transpose on the XLU (idle otherwise) and keep only the real rows, so the
    # HBM writeback is [head_rows, TB] instead of [TB, 128].
    head_t = jnp.transpose(head)[:head_rows, :]          # [HR, TB]

    # Numerically stable softplus on the small transposed tile (EUP).
    sp = jnp.maximum(head_t, 0.0) + jnp.log1p(jnp.exp(-jnp.abs(head_t)))

    # Rows [0, act_dim) -> mean (identity); rows [act_dim, 2*act_dim) -> softplus.
    row = lax.broadcasted_iota(jnp.int32, head_t.shape, 0)
    out_ref[...] = jnp.where(row >= act_dim, sp, head_t).astype(out_ref.dtype)


@functools.partial(jax.jit, static_argnames=("block_b", "use_bf16"))
def policy_net_forward(obs, params, block_b: int = 2048, use_bf16: bool = True):
    """Reshape params into kernel layout, tile the batch, invoke pallas_call."""
    w1, b1, w2, b2, wm, bm, ws, bs = params
    B, obs_dim = obs.shape
    h1_dim = w1.shape[1]
    h2_dim = w2.shape[1]
    act_dim = wm.shape[1]

    # --- fuse mean/std heads into one lane-padded (128-wide) matmul ---------
    head_dim = 2 * act_dim
    P = max(128, _round_up(head_dim, 128))    # lane-padded head matmul width
    HR = _round_up(head_dim, 8)               # sublane rows actually written back
    wh = jnp.concatenate([wm, ws], axis=1)                    # [h2, 2*act]
    wh = jnp.pad(wh, ((0, 0), (0, P - head_dim))).astype(jnp.float32)   # [h2, P]
    bh = jnp.concatenate([bm, bs], axis=0)
    bh = jnp.pad(bh, (0, P - head_dim)).reshape(1, P).astype(jnp.float32)

    # Biases as [1, out] f32 rows (VPU/EUP math stays f32 on all chips).
    b1r = b1.reshape(1, h1_dim).astype(jnp.float32)
    b2r = b2.reshape(1, h2_dim).astype(jnp.float32)

    # Matmul-operand dtype: bf16 by default (f32 accumulation everywhere).
    mat_dtype = jnp.bfloat16 if use_bf16 else jnp.float32
    obs_m = obs.astype(mat_dtype)
    w1m = w1.astype(mat_dtype)
    w2m = w2.astype(mat_dtype)

    # --- batch tiling: balanced, lane-dense (multiple-of-128) tiles ---------
    LANE = 128
    n_tiles = max(pl.cdiv(B, block_b), 1)
    if n_tiles == 1 and B > 4 * LANE:
        n_tiles = 2          # keep both v7x TensorCores busy at larger batches
    TB = _round_up(pl.cdiv(B, n_tiles), LANE)   # output-lane-dense batch tile
    Bp = TB * n_tiles
    if Bp != B:
        obs_m = jnp.pad(obs_m, ((0, Bp - B), (0, 0)))

    kernel = functools.partial(policy_net_kernel, act_dim=act_dim, head_rows=HR)

    out_t = pl.pallas_call(
        kernel,
        out_shape=jax.ShapeDtypeStruct((HR, Bp), jnp.float32),
        grid_spec=pltpu.PrefetchScalarGridSpec(
            num_scalar_prefetch=0,
            grid=(n_tiles,),
            in_specs=[
                pl.BlockSpec((TB, obs_dim), lambda i: (i, 0)),      # obs tile
                pl.BlockSpec((obs_dim, h1_dim), lambda i: (0, 0)),  # W1 (resident)
                pl.BlockSpec((1, h1_dim), lambda i: (0, 0)),        # b1
                pl.BlockSpec((h1_dim, h2_dim), lambda i: (0, 0)),   # W2
                pl.BlockSpec((1, h2_dim), lambda i: (0, 0)),        # b2
                pl.BlockSpec((h2_dim, P), lambda i: (0, 0)),        # fused head W
                pl.BlockSpec((1, P), lambda i: (0, 0)),             # fused head b
            ],
            out_specs=pl.BlockSpec((HR, TB), lambda i: (0, i)),     # transposed
        ),
        compiler_params=pltpu.CompilerParams(
            dimension_semantics=("parallel",),   # shard batch tiles on v7x's 2 TCs
        ),
    )(obs_m, w1m, b1r, w2m, b2r, wh, bh)

    # Tiny [*, B] slices + transposes handled by XLA outside the kernel.
    mean = out_t[:act_dim, :B].T
    std = out_t[act_dim:head_dim, :B].T
    return mean, std


def init_params(key, obs_dim, act_dim, hidden_dim_1=64, hidden_dim_2=64):
    """PyTorch nn.Linear-style init (uniform +/- 1/sqrt(fan_in)).

    Weights stored [in_features, out_features] (kernel layout).
    """
    ks = jax.random.split(key, 8)

    def linear(kw, kb, fan_in, fan_out):
        bound = 1.0 / jnp.sqrt(jnp.float32(fan_in))
        w = jax.random.uniform(kw, (fan_in, fan_out), jnp.float32, -bound, bound)
        b = jax.random.uniform(kb, (fan_out,), jnp.float32, -bound, bound)
        return w, b

    w1, b1 = linear(ks[0], ks[1], obs_dim, hidden_dim_1)
    w2, b2 = linear(ks[2], ks[3], hidden_dim_1, hidden_dim_2)
    wm, bm = linear(ks[4], ks[5], hidden_dim_2, act_dim)
    ws, bs = linear(ks[6], ks[7], hidden_dim_2, act_dim)
    return (w1, b1, w2, b2, wm, bm, ws, bs)


def reference_forward(obs, params):
    """Pure-JAX reference for correctness checking."""
    w1, b1, w2, b2, wm, bm, ws, bs = params
    h = jnp.tanh(obs @ w1 + b1)
    h = jnp.tanh(h @ w2 + b2)
    mean = h @ wm + bm
    s_lin = h @ ws + bs
    std = jnp.maximum(s_lin, 0.0) + jnp.log1p(jnp.exp(-jnp.abs(s_lin)))
    return mean, std


if __name__ == "__main__":
    key = jax.random.PRNGKey(0)
    k_obs, k_obs2, k_obs3, k_params = jax.random.split(key, 4)

    batch = 8
    obs_dim = 32
    act_dim = 4
    hidden_dim_1 = 64
    hidden_dim_2 = 64

    obs = jax.random.normal(k_obs, (batch, obs_dim), dtype=jnp.float32)
    params = init_params(k_params, obs_dim, act_dim, hidden_dim_1, hidden_dim_2)

    # Small single-tile run (f32 operands, tight tolerance).
    mean, std = policy_net_forward(obs, params, use_bf16=False)
    jax.block_until_ready((mean, std))
    ref_mean, ref_std = reference_forward(obs, params)
    assert mean.shape == (batch, act_dim)
    assert std.shape == (batch, act_dim)
    assert jnp.allclose(mean, ref_mean, atol=1e-5, rtol=1e-5)
    assert jnp.allclose(std, ref_std, atol=1e-5, rtol=1e-5)
    assert bool(jnp.all(std > 0.0))

    # Multi-tile grid + ragged-batch padding path (f32, small block to force 3 tiles).
    big_batch = 300
    obs_big = jax.random.normal(k_obs2, (big_batch, obs_dim), dtype=jnp.float32)
    mean_b, std_b = policy_net_forward(obs_big, params, block_b=128, use_bf16=False)
    jax.block_until_ready((mean_b, std_b))
    ref_mean_b, ref_std_b = reference_forward(obs_big, params)
    assert mean_b.shape == (big_batch, act_dim)
    assert std_b.shape == (big_batch, act_dim)
    assert jnp.allclose(mean_b, ref_mean_b, atol=1e-5, rtol=1e-5)
    assert jnp.allclose(std_b, ref_std_b, atol=1e-5, rtol=1e-5)

    # Default path: bf16 matmul operands + forced 2-tile split (B > 512).
    big_batch2 = 600
    obs_big2 = jax.random.normal(k_obs3, (big_batch2, obs_dim), dtype=jnp.float32)
    mean_c, std_c = policy_net_forward(obs_big2, params)
    jax.block_until_ready((mean_c, std_c))
    ref_mean_c, ref_std_c = reference_forward(obs_big2, params)
    assert mean_c.shape == (big_batch2, act_dim)
    assert std_c.shape == (big_batch2, act_dim)
    assert jnp.allclose(mean_c, ref_mean_c, atol=3e-2, rtol=3e-2)
    assert jnp.allclose(std_c, ref_std_c, atol=3e-2, rtol=3e-2)
    assert bool(jnp.all(std_c > 0.0))

    print("KERNEL_OK")
</pallas_src>

<mosaic_0001>
module attributes {stable_mosaic.version = 11 : i64} {
  func.func @policy_net_kernel(%arg0: i32, %arg1: memref<128x32xf32, #tpu.memory_space<vmem>>, %arg2: memref<32x64xf32, #tpu.memory_space<vmem>>, %arg3: memref<1x64xf32, #tpu.memory_space<vmem>>, %arg4: memref<64x64xf32, #tpu.memory_space<vmem>>, %arg5: memref<1x64xf32, #tpu.memory_space<vmem>>, %arg6: memref<64x128xf32, #tpu.memory_space<vmem>>, %arg7: memref<1x128xf32, #tpu.memory_space<vmem>>, %arg8: memref<8x128xf32, #tpu.memory_space<vmem>>) attributes {dimension_semantics = [#tpu.dimension_semantics<parallel>], iteration_bounds = array<i64: 1>, scalar_prefetch = 0 : i64, scratch_operands = 0 : i64, tpu.core_type = #tpu.core_type<tc>, window_params = [{transform_indices = @transform_0, window_bounds = array<i64: 128, 32>}, {pipeline_mode = #tpu.pipeline_mode<synchronous>, transform_indices = @transform_1, window_bounds = array<i64: 32, 64>}, {pipeline_mode = #tpu.pipeline_mode<synchronous>, transform_indices = @transform_2, window_bounds = array<i64: 1, 64>}, {pipeline_mode = #tpu.pipeline_mode<synchronous>, transform_indices = @transform_3, window_bounds = array<i64: 64, 64>}, {pipeline_mode = #tpu.pipeline_mode<synchronous>, transform_indices = @transform_4, window_bounds = array<i64: 1, 64>}, {pipeline_mode = #tpu.pipeline_mode<synchronous>, transform_indices = @transform_5, window_bounds = array<i64: 64, 128>}, {pipeline_mode = #tpu.pipeline_mode<synchronous>, transform_indices = @transform_6, window_bounds = array<i64: 1, 128>}, {transform_indices = @transform_7, window_bounds = array<i64: 8, 128>}]} {
    %c0 = arith.constant 0 : index
    %c0_0 = arith.constant 0 : index
    %0 = vector.load %arg1[%c0, %c0_0] : memref<128x32xf32, #tpu.memory_space<vmem>>, vector<128x32xf32>
    %c0_1 = arith.constant 0 : index
    %c0_2 = arith.constant 0 : index
    %1 = vector.load %arg2[%c0_1, %c0_2] : memref<32x64xf32, #tpu.memory_space<vmem>>, vector<32x64xf32>
    %cst = arith.constant dense<0.000000e+00> : vector<128x64xf32>
    %2 = tpu.matmul %0, %1, %cst {dimension_numbers = #tpu.dot_dimension_numbers<[1], [0], [0], [1], [0, 0, 1, 1], [], []>} : vector<128x32xf32>, vector<32x64xf32>, vector<128x64xf32> -> vector<128x64xf32>
    %c0_3 = arith.constant 0 : index
    %c0_4 = arith.constant 0 : index
    %3 = vector.load %arg3[%c0_3, %c0_4] : memref<1x64xf32, #tpu.memory_space<vmem>>, vector<1x64xf32>
    %4 = vector.broadcast %3 : vector<1x64xf32> to vector<128x64xf32>
    %5 = arith.addf %2, %4 : vector<128x64xf32>
    %6 = math.tanh %5 : vector<128x64xf32>
    %c0_5 = arith.constant 0 : index
    %c0_6 = arith.constant 0 : index
    %7 = vector.load %arg4[%c0_5, %c0_6] : memref<64x64xf32, #tpu.memory_space<vmem>>, vector<64x64xf32>
    %cst_7 = arith.constant dense<0.000000e+00> : vector<128x64xf32>
    %8 = tpu.matmul %6, %7, %cst_7 {dimension_numbers = #tpu.dot_dimension_numbers<[1], [0], [0], [1], [0, 0, 1, 1], [], []>} : vector<128x64xf32>, vector<64x64xf32>, vector<128x64xf32> -> vector<128x64xf32>
    %c0_8 = arith.constant 0 : index
    %c0_9 = arith.constant 0 : index
    %9 = vector.load %arg5[%c0_8, %c0_9] : memref<1x64xf32, #tpu.memory_space<vmem>>, vector<1x64xf32>
    %10 = vector.broadcast %9 : vector<1x64xf32> to vector<128x64xf32>
    %11 = arith.addf %8, %10 : vector<128x64xf32>
    %12 = math.tanh %11 : vector<128x64xf32>
    %c0_10 = arith.constant 0 : index
    %c0_11 = arith.constant 0 : index
    %13 = vector.load %arg6[%c0_10, %c0_11] : memref<64x128xf32, #tpu.memory_space<vmem>>, vector<64x128xf32>
    %cst_12 = arith.constant dense<0.000000e+00> : vector<128x128xf32>
    %14 = tpu.matmul %12, %13, %cst_12 {dimension_numbers = #tpu.dot_dimension_numbers<[1], [0], [0], [1], [0, 0, 1, 1], [], []>} : vector<128x64xf32>, vector<64x128xf32>, vector<128x128xf32> -> vector<128x128xf32>
    %c0_13 = arith.constant 0 : index
    %c0_14 = arith.constant 0 : index
    %15 = vector.load %arg7[%c0_13, %c0_14] : memref<1x128xf32, #tpu.memory_space<vmem>>, vector<1x128xf32>
    %16 = vector.broadcast %15 : vector<1x128xf32> to vector<128x128xf32>
    %17 = arith.addf %14, %16 : vector<128x128xf32>
    %18 = tpu.transpose %17, [1, 0] : vector<128x128xf32> -> vector<128x128xf32>
    %19 = vector.extract_strided_slice %18 {offsets = [0, 0], sizes = [8, 128], strides = [1, 1]} : vector<128x128xf32> to vector<8x128xf32>
    %cst_15 = arith.constant 0.000000e+00 : f32
    %20 = vector.broadcast %cst_15 : f32 to vector<8x128xf32>
    %21 = arith.maximumf %19, %20 : vector<8x128xf32>
    %22 = math.absf %19 : vector<8x128xf32>
    %cst_16 = arith.constant 0.000000e+00 : f32
    %23 = vector.broadcast %cst_16 : f32 to vector<8x128xf32>
    %24 = arith.subf %23, %22 : vector<8x128xf32>
    %25 = math.exp %24 : vector<8x128xf32>
    %26 = math.log1p %25 : vector<8x128xf32>
    %27 = arith.addf %21, %26 : vector<8x128xf32>
    %28 = tpu.iota {dimensions = array<i32: 0>} : vector<8x128xi32>
    %c4_i32 = arith.constant 4 : i32
    %29 = vector.broadcast %c4_i32 : i32 to vector<8x128xi32>
    %30 = arith.cmpi sge, %28, %29 : vector<8x128xi32>
    %31 = arith.select %30, %27, %19 : vector<8x128xi1>, vector<8x128xf32>
    %c0_17 = arith.constant 0 : index
    %c0_18 = arith.constant 0 : index
    %32 = vector.load %arg8[%c0_17, %c0_18] : memref<8x128xf32, #tpu.memory_space<vmem>>, vector<8x128xf32>
    tpu.vector_store %arg8[%c0_17, %c0_18], %31 {strides = array<i32>} : memref<8x128xf32, #tpu.memory_space<vmem>>, vector<8x128xf32>,
    return
  }
  func.func @transform_0(%arg0: i32) -> (i32, i32) {
    %c0_i32 = arith.constant 0 : i32
    %c0_i32_0 = arith.constant 0 : i32
    return %arg0, %c0_i32 : i32, i32
  }
  func.func @transform_1(%arg0: i32) -> (i32, i32) {
    %c0_i32 = arith.constant 0 : i32
    %c0_i32_0 = arith.constant 0 : i32
    %c0_i32_1 = arith.constant 0 : i32
    return %c0_i32, %c0_i32_0 : i32, i32
  }
  func.func @transform_2(%arg0: i32) -> (i32, i32) {
    %c0_i32 = arith.constant 0 : i32
    %c0_i32_0 = arith.constant 0 : i32
    %c0_i32_1 = arith.constant 0 : i32
    return %c0_i32, %c0_i32_0 : i32, i32
  }
  func.func @transform_3(%arg0: i32) -> (i32, i32) {
    %c0_i32 = arith.constant 0 : i32
    %c0_i32_0 = arith.constant 0 : i32
    %c0_i32_1 = arith.constant 0 : i32
    return %c0_i32, %c0_i32_0 : i32, i32
  }
  func.func @transform_4(%arg0: i32) -> (i32, i32) {
    %c0_i32 = arith.constant 0 : i32
    %c0_i32_0 = arith.constant 0 : i32
    %c0_i32_1 = arith.constant 0 : i32
    return %c0_i32, %c0_i32_0 : i32, i32
  }
  func.func @transform_5(%arg0: i32) -> (i32, i32) {
    %c0_i32 = arith.constant 0 : i32
    %c0_i32_0 = arith.constant 0 : i32
    %c0_i32_1 = arith.constant 0 : i32
    return %c0_i32, %c0_i32_0 : i32, i32
  }
  func.func @transform_6(%arg0: i32) -> (i32, i32) {
    %c0_i32 = arith.constant 0 : i32
    %c0_i32_0 = arith.constant 0 : i32
    %c0_i32_1 = arith.constant 0 : i32
    return %c0_i32, %c0_i32_0 : i32, i32
  }
  func.func @transform_7(%arg0: i32) -> (i32, i32) {
    %c0_i32 = arith.constant 0 : i32
    %c0_i32_0 = arith.constant 0 : i32
    return %c0_i32, %arg0 : i32, i32
  }
}

</mosaic_0001>

<llo_original>
// kernel: policy_net_forward.1
$region0: #{policy_net_forward.1}
  #allocation0 [shape = 'u32[]', space=smem, size = 0x4, offset = 0x4, fixed_abs, tag = 'smem constant byte address 0x4 - core index']
  #allocation1 [shape = 'u32[144,128]{1,0:T(1,128)}', space=vmem, size = 0x12000, scoped, tag = 'internal scratch']
  %s0 = inlined_call_operand.vmem [shape: f32[128,32], index: 0, kind: input, shape index: {}]
  %s1 = inlined_call_operand.vmem [shape: f32[32,64], index: 1, kind: input, shape index: {}]
  %s2 = inlined_call_operand.vmem [shape: f32[1,64], index: 2, kind: input, shape index: {}]
  %s3 = inlined_call_operand.vmem [shape: f32[64,64], index: 3, kind: input, shape index: {}]
  %s4 = inlined_call_operand.vmem [shape: f32[1,64], index: 4, kind: input, shape index: {}]
  %s5 = inlined_call_operand.vmem [shape: f32[64,128], index: 5, kind: input, shape index: {}]
  %s6 = inlined_call_operand.vmem [shape: f32[1,128], index: 6, kind: input, shape index: {}]
  %s7 = inlined_call_operand.vmem [shape: f32[8,128], index: 7, kind: output, shape index: {}]
  %s8 = sld [smem:[#allocation0]]
  $region38: #{policy_net_forward.1} parent=0
    _
  %s10 = ssub.s32 1, %s8
  %s11 = scalar_select 0, %s10, %s8
  // Predicated region
  $region2: #{policy_net_forward.1} parent=0 // pred_check
    _
  $region3: #{policy_net_forward.1} parent=0 // pred_check_branch
    %13 = sbr.rel (0) target = $region5
  $region4: #{policy_net_forward.1} parent=0 // pred_region
    _
  $region5: #{policy_net_forward.1} parent=0 // pred_fallthru
    _
  // Predicated region
  $region6: #{policy_net_forward.1} parent=0 // pred_check
    _
  $region7: #{policy_net_forward.1} parent=0 // pred_check_branch
    %15 = sbr.rel (0) target = $region9
  $region8: #{policy_net_forward.1} parent=0 // pred_region
    _
  $region9: #{policy_net_forward.1} parent=0 // pred_fallthru
    _
  // Predicated region
  $region10: #{policy_net_forward.1} parent=0 // pred_check
    _
  $region11: #{policy_net_forward.1} parent=0 // pred_check_branch
    %17 = sbr.rel (0) target = $region13
  $region12: #{policy_net_forward.1} parent=0 // pred_region
    _
  $region13: #{policy_net_forward.1} parent=0 // pred_fallthru
    _
  // Predicated region
  $region14: #{policy_net_forward.1} parent=0 // pred_check
    _
  $region15: #{policy_net_forward.1} parent=0 // pred_check_branch
    %19 = sbr.rel (0) target = $region17
  $region16: #{policy_net_forward.1} parent=0 // pred_region
    _
  $region17: #{policy_net_forward.1} parent=0 // pred_fallthru
    _
  // Predicated region
  $region18: #{policy_net_forward.1} parent=0 // pred_check
    _
  $region19: #{policy_net_forward.1} parent=0 // pred_check_branch
    %21 = sbr.rel (0) target = $region21
  $region20: #{policy_net_forward.1} parent=0 // pred_region
    _
  $region21: #{policy_net_forward.1} parent=0 // pred_fallthru
    _
  // Predicated region
  $region22: #{policy_net_forward.1} parent=0 // pred_check
    _
  $region23: #{policy_net_forward.1} parent=0 // pred_check_branch
    %23 = sbr.rel (0) target = $region25
  $region24: #{policy_net_forward.1} parent=0 // pred_region
    _
  $region25: #{policy_net_forward.1} parent=0 // pred_fallthru
    _
  // Predicated region
  $region26: #{policy_net_forward.1} parent=0 // pred_check
    _
  $region27: #{policy_net_forward.1} parent=0 // pred_check_branch
    %25 = sbr.rel (0) target = $region29
  $region28: #{policy_net_forward.1} parent=0 // pred_region
    _
  $region29: #{policy_net_forward.1} parent=0 // pred_fallthru
    _
  %v26 = vld [vmem:[%s0] sm:$0xff]
  %v27 = vld [vmem:[%s0 + $0x8] sm:$0xff]
  %v28 = vld [vmem:[%s0 + $0x10] sm:$0xff]
  %v29 = vld [vmem:[%s0 + $0x18] sm:$0xff]
  %v30 = vld [vmem:[%s0 + $0x20] sm:$0xff]
  %v31 = vld [vmem:[%s0 + $0x28] sm:$0xff]
  %v32 = vld [vmem:[%s0 + $0x30] sm:$0xff]
  %v33 = vld [vmem:[%s0 + $0x38] sm:$0xff]
  %v34 = vld [vmem:[%s0 + $0x40] sm:$0xff]
  %v35 = vld [vmem:[%s0 + $0x48] sm:$0xff]
  %v36 = vld [vmem:[%s0 + $0x50] sm:$0xff]
  %v37 = vld [vmem:[%s0 + $0x58] sm:$0xff]
  %v38 = vld [vmem:[%s0 + $0x60] sm:$0xff]
  %v39 = vld [vmem:[%s0 + $0x68] sm:$0xff]
  %v40 = vld [vmem:[%s0 + $0x70] sm:$0xff]
  %v41 = vld [vmem:[%s0 + $0x78] sm:$0xff]
  %v42 = vld [vmem:[%s1] sm:$0xff]
  %v43 = vld [vmem:[%s1 + $0x8] sm:$0xff]
  %v44 = vld [vmem:[%s1 + $0x10] sm:$0xff]
  %v45 = vld [vmem:[%s1 + $0x18] sm:$0xff]
  %v46 = vld [vmem:[%s2] sm:$0x1]
  %v48 = vlaneseq
  %v49 = vshrl.u32 %v48, 7
  %v50 = vsub.s32 0, %v49
  %v51 = vrot.slane %v46, %v50
  %vm53 = vcmask 261120
  %v55 = vsel %vm53, %v26, 0
  %v58 = vsel %vm53, %v27, 0
  %v61 = vsel %vm53, %v28, 0
  %v64 = vsel %vm53, %v29, 0
  %v67 = vsel %vm53, %v30, 0
  %v70 = vsel %vm53, %v31, 0
  %v73 = vsel %vm53, %v32, 0
  %v76 = vsel %vm53, %v33, 0
  %v79 = vsel %vm53, %v34, 0
  %v82 = vsel %vm53, %v35, 0
  %v85 = vsel %vm53, %v36, 0
  %v88 = vsel %vm53, %v37, 0
  %v91 = vsel %vm53, %v38, 0
  %v94 = vsel %vm53, %v39, 0
  %v97 = vsel %vm53, %v40, 0
  %v100 = vsel %vm53, %v41, 0
  %102 = vmatprep.subr.mxu0 0.0
  %103 = vmatpush1.msra.mxu0 %v42
  %104 = vmatprep.subr.mxu0 0.0
  %105 = vmatpush1.msra.mxu0 %v43
  %106 = vmatprep.subr.mxu0 0.0
  %107 = vmatpush1.msra.mxu0 %v44
  %108 = vmatprep.subr.mxu0 0.0
  %109 = vmatpush1.msra.mxu0 %v45
  %110 = vmatprep.subr.mxu0 0.0
  %111 = vmatpush1.msra.mxu0 0.0
  %112 = vmatprep.subr.mxu0 0.0
  %113 = vmatpush1.msra.mxu0 0.0
  %114 = vmatprep.subr.mxu0 0.0
  %115 = vmatpush1.msra.mxu0 0.0
  %116 = vmatprep.subr.mxu0 0.0
  %117 = vmatpush1.msra.mxu0 0.0
  %118 = vmatprep.subr.mxu0 0.0
  %119 = vmatpush1.msra.mxu0 0.0
  %120 = vmatprep.subr.mxu0 0.0
  %121 = vmatpush1.msra.mxu0 0.0
  %122 = vmatprep.subr.mxu0 0.0
  %123 = vmatpush1.msra.mxu0 0.0
  %124 = vmatprep.subr.mxu0 0.0
  %125 = vmatpush1.msra.mxu0 0.0
  %126 = vmatprep.subr.mxu0 0.0
  %127 = vmatpush1.msra.mxu0 0.0
  %128 = vmatprep.subr.mxu0 0.0
  %129 = vmatpush1.msra.mxu0 0.0
  %130 = vmatprep.subr.mxu0 0.0
  %131 = vmatpush1.msra.mxu0 0.0
  %132 = vmatprep.subr.mxu0 0.0
  %133 = vmatpush1.msra.mxu0 0.0
  %134 = vmatprep.subr.mxu0 0.0
  %135 = vmatpush1.msra.mxu0 0.0
  %136 = vmatprep.subr.mxu0 0.0
  %137 = vmatpush1.msra.mxu0 0.0
  %138 = vmatprep.subr.mxu0 0.0
  %139 = vmatpush1.msra.mxu0 0.0
  %140 = vmatprep.subr.mxu0 0.0
  %141 = vmatpush1.msra.mxu0 0.0
  %142 = vmatprep.subr.mxu0 0.0
  %143 = vmatpush1.msra.mxu0 0.0
  %144 = vmatprep.subr.mxu0 0.0
  %145 = vmatpush1.msra.mxu0 0.0
  %146 = vmatprep.subr.mxu0 0.0
  %147 = vmatpush1.msra.mxu0 0.0
  %148 = vmatprep.subr.mxu0 0.0
  %149 = vmatpush1.msra.mxu0 0.0
  %150 = vmatprep.subr.mxu0 0.0
  %151 = vmatpush1.msra.mxu0 0.0
  %152 = vmatprep.subr.mxu0 0.0
  %153 = vmatpush1.msra.mxu0 0.0
  %154 = vmatprep.subr.mxu0 0.0
  %155 = vmatpush1.msra.mxu0 0.0
  %156 = vmatprep.subr.mxu0 0.0
  %157 = vmatpush1.msra.mxu0 0.0
  %158 = vmatprep.subr.mxu0 0.0
  %159 = vmatpush1.msra.mxu0 0.0
  %160 = vmatprep.subr.mxu0 0.0
  %161 = vmatpush1.msra.mxu0 0.0
  %162 = vmatprep.subr.mxu0 0.0
  %163 = vmatpush1.msra.mxu0 0.0
  %164 = vmatprep.subr.mxu0 0.0
  %165 = vmatpush1.msra.mxu0 0.0
  %166 = vmatprep.mubr.f32.mxu0 0.0
  %167 = vmatmul.mubr.f32.gmra.mrb[0].mxu0 %v55
  %v168 = vpop.f32.mrb[0].mxu0
  %v169 = vadd.f32 %v51, %v168
  %v170 = vpop.f32.mrb[0].mxu0
  %171 = vmatprep.mubr.f32.mxu0 0.0
  %172 = vmatmul.mubr.f32.gmra.mrb[0].mxu0 %v58
  %v173 = vpop.f32.mrb[0].mxu0
  %v174 = vadd.f32 %v51, %v173
  %v175 = vpop.f32.mrb[0].mxu0
  %176 = vmatprep.mubr.f32.mxu0 0.0
  %177 = vmatmul.mubr.f32.gmra.mrb[0].mxu0 %v61
  %v178 = vpop.f32.mrb[0].mxu0
  %v179 = vadd.f32 %v51, %v178
  %v180 = vpop.f32.mrb[0].mxu0
  %181 = vmatprep.mubr.f32.mxu0 0.0
  %182 = vmatmul.mubr.f32.gmra.mrb[0].mxu0 %v64
  %v183 = vpop.f32.mrb[0].mxu0
  %v184 = vadd.f32 %v51, %v183
  %v185 = vpop.f32.mrb[0].mxu0
  %186 = vmatprep.mubr.f32.mxu0 0.0
  %187 = vmatmul.mubr.f32.gmra.mrb[0].mxu0 %v67
  %v188 = vpop.f32.mrb[0].mxu0
  %v189 = vadd.f32 %v51, %v188
  %v190 = vpop.f32.mrb[0].mxu0
  %191 = vmatprep.mubr.f32.mxu0 0.0
  %192 = vmatmul.mubr.f32.gmra.mrb[0].mxu0 %v70
  %v193 = vpop.f32.mrb[0].mxu0
  %v194 = vadd.f32 %v51, %v193
  %v195 = vpop.f32.mrb[0].mxu0
  %196 = vmatprep.mubr.f32.mxu0 0.0
  %197 = vmatmul.mubr.f32.gmra.mrb[0].mxu0 %v73
  %v198 = vpop.f32.mrb[0].mxu0
  %v199 = vadd.f32 %v51, %v198
  %v200 = vpop.f32.mrb[0].mxu0
  %201 = vmatprep.mubr.f32.mxu0 0.0
  %202 = vmatmul.mubr.f32.gmra.mrb[0].mxu0 %v76
  %v203 = vpop.f32.mrb[0].mxu0
  %v204 = vadd.f32 %v51, %v203
  %v205 = vpop.f32.mrb[0].mxu0
  %206 = vmatprep.mubr.f32.mxu0 0.0
  %207 = vmatmul.mubr.f32.gmra.mrb[0].mxu0 %v79
  %v208 = vpop.f32.mrb[0].mxu0
  %v209 = vadd.f32 %v51, %v208
  %v210 = vpop.f32.mrb[0].mxu0
  %211 = vmatprep.mubr.f32.mxu0 0.0
  %212 = vmatmul.mubr.f32.gmra.mrb[0].mxu0 %v82
  %v213 = vpop.f32.mrb[0].mxu0
  %v214 = vadd.f32 %v51, %v213
  %v215 = vpop.f32.mrb[0].mxu0
  %216 = vmatprep.mubr.f32.mxu0 0.0
  %217 = vmatmul.mubr.f32.gmra.mrb[0].mxu0 %v85
  %v218 = vpop.f32.mrb[0].mxu0
  %v219 = vadd.f32 %v51, %v218
  %v220 = vpop.f32.mrb[0].mxu0
  %221 = vmatprep.mubr.f32.mxu0 0.0
  %222 = vmatmul.mubr.f32.gmra.mrb[0].mxu0 %v88
  %v223 = vpop.f32.mrb[0].mxu0
  %v224 = vadd.f32 %v51, %v223
  %v225 = vpop.f32.mrb[0].mxu0
  %226 = vmatprep.mubr.f32.mxu0 0.0
  %227 = vmatmul.mubr.f32.gmra.mrb[0].mxu0 %v91
  %v228 = vpop.f32.mrb[0].mxu0
  %v229 = vadd.f32 %v51, %v228
  %v230 = vpop.f32.mrb[0].mxu0
  %231 = vmatprep.mubr.f32.mxu0 0.0
  %232 = vmatmul.mubr.f32.gmra.mrb[0].mxu0 %v94
  %v233 = vpop.f32.mrb[0].mxu0
  %v234 = vadd.f32 %v51, %v233
  %v235 = vpop.f32.mrb[0].mxu0
  %236 = vmatprep.mubr.f32.mxu0 0.0
  %237 = vmatmul.mubr.f32.gmra.mrb[0].mxu0 %v97
  %v238 = vpop.f32.mrb[0].mxu0
  %v239 = vadd.f32 %v51, %v238
  %v240 = vpop.f32.mrb[0].mxu0
  %241 = vmatprep.mubr.f32.mxu0 0.0
  %242 = vmatmul.mubr.f32.gmra.mrb[0].mxu0 %v100
  %v243 = vpop.f32.mrb[0].mxu0
  %v244 = vadd.f32 %v51, %v243
  %v245 = vpop.f32.mrb[0].mxu0
  %246 = vdwg.mxu0
  %v247 = vtanh.pop %v169
  %v248 = vtanh.pop %v174
  %v249 = vtanh.pop %v179
  %v250 = vtanh.pop %v184
  %v251 = vtanh.pop %v189
  %v252 = vtanh.pop %v194
  %v253 = vtanh.pop %v199
  %v254 = vtanh.pop %v204
  %v255 = vtanh.pop %v209
  %v256 = vtanh.pop %v214
  %v257 = vtanh.pop %v219
  %v258 = vtanh.pop %v224
  %v259 = vtanh.pop %v229
  %v260 = vtanh.pop %v234
  %v261 = vtanh.pop %v239
  %v262 = vtanh.pop %v244
  %v263 = vld [vmem:[%s3] sm:$0xff]
  %v264 = vld [vmem:[%s3 + $0x8] sm:$0xff]
  %v265 = vld [vmem:[%s3 + $0x10] sm:$0xff]
  %v266 = vld [vmem:[%s3 + $0x18] sm:$0xff]
  %v267 = vld [vmem:[%s3 + $0x20] sm:$0xff]
  %v268 = vld [vmem:[%s3 + $0x28] sm:$0xff]
  %v269 = vld [vmem:[%s3 + $0x30] sm:$0xff]
  %v270 = vld [vmem:[%s3 + $0x38] sm:$0xff]
  %v271 = vld [vmem:[%s4] sm:$0x1]
  %v273 = vlaneseq
  %v274 = vshrl.u32 %v273, 7
  %v275 = vsub.s32 0, %v274
  %v276 = vrot.slane %v271, %v275
  %vm278 = vcmask 523264
  %v280 = vsel %vm278, %v247, 0
  %v283 = vsel %vm278, %v248, 0
  %v286 = vsel %vm278, %v249, 0
  %v289 = vsel %vm278, %v250, 0
  %v292 = vsel %vm278, %v251, 0
  %v295 = vsel %vm278, %v252, 0
  %v298 = vsel %vm278, %v253, 0
  %v301 = vsel %vm278, %v254, 0
  %v304 = vsel %vm278, %v255, 0
  %v307 = vsel %vm278, %v256, 0
  %v310 = vsel %vm278, %v257, 0
  %v313 = vsel %vm278, %v258, 0
  %v316 = vsel %vm278, %v259, 0
  %v319 = vsel %vm278, %v260, 0
  %v322 = vsel %vm278, %v261, 0
  %v325 = vsel %vm278, %v262, 0
  %327 = vmatprep.subr.mxu0 0.0
  %328 = vmatpush1.msra.mxu0 %v263
  %329 = vmatprep.subr.mxu0 0.0
  %330 = vmatpush1.msra.mxu0 %v264
  %331 = vmatprep.subr.mxu0 0.0
  %332 = vmatpush1.msra.mxu0 %v265
  %333 = vmatprep.subr.mxu0 0.0
  %334 = vmatpush1.msra.mxu0 %v266
  %335 = vmatprep.subr.mxu0 0.0
  %336 = vmatpush1.msra.mxu0 %v267
  %337 = vmatprep.subr.mxu0 0.0
  %338 = vmatpush1.msra.mxu0 %v268
  %339 = vmatprep.subr.mxu0 0.0
  %340 = vmatpush1.msra.mxu0 %v269
  %341 = vmatprep.subr.mxu0 0.0
  %342 = vmatpush1.msra.mxu0 %v270
  %343 = vmatprep.subr.mxu0 0.0
  %344 = vmatpush1.msra.mxu0 0.0
  %345 = vmatprep.subr.mxu0 0.0
  %346 = vmatpush1.msra.mxu0 0.0
  %347 = vmatprep.subr.mxu0 0.0
  %348 = vmatpush1.msra.mxu0 0.0
  %349 = vmatprep.subr.mxu0 0.0
  %350 = vmatpush1.msra.mxu0 0.0
  %351 = vmatprep.subr.mxu0 0.0
  %352 = vmatpush1.msra.mxu0 0.0
  %353 = vmatprep.subr.mxu0 0.0
  %354 = vmatpush1.msra.mxu0 0.0
  %355 = vmatprep.subr.mxu0 0.0
  %356 = vmatpush1.msra.mxu0 0.0
  %357 = vmatprep.subr.mxu0 0.0
  %358 = vmatpush1.msra.mxu0 0.0
  %359 = vmatprep.subr.mxu0 0.0
  %360 = vmatpush1.msra.mxu0 0.0
  %361 = vmatprep.subr.mxu0 0.0
  %362 = vmatpush1.msra.mxu0 0.0
  %363 = vmatprep.subr.mxu0 0.0
  %364 = vmatpush1.msra.mxu0 0.0
  %365 = vmatprep.subr.mxu0 0.0
  %366 = vmatpush1.msra.mxu0 0.0
  %367 = vmatprep.subr.mxu0 0.0
  %368 = vmatpush1.msra.mxu0 0.0
  %369 = vmatprep.subr.mxu0 0.0
  %370 = vmatpush1.msra.mxu0 0.0
  %371 = vmatprep.subr.mxu0 0.0
  %372 = vmatpush1.msra.mxu0 0.0
  %373 = vmatprep.subr.mxu0 0.0
  %374 = vmatpush1.msra.mxu0 0.0
  %375 = vmatprep.subr.mxu0 0.0
  %376 = vmatpush1.msra.mxu0 0.0
  %377 = vmatprep.subr.mxu0 0.0
  %378 = vmatpush1.msra.mxu0 0.0
  %379 = vmatprep.subr.mxu0 0.0
  %380 = vmatpush1.msra.mxu0 0.0
  %381 = vmatprep.subr.mxu0 0.0
  %382 = vmatpush1.msra.mxu0 0.0
  %383 = vmatprep.subr.mxu0 0.0
  %384 = vmatpush1.msra.mxu0 0.0
  %385 = vmatprep.subr.mxu0 0.0
  %386 = vmatpush1.msra.mxu0 0.0
  %387 = vmatprep.subr.mxu0 0.0
  %388 = vmatpush1.msra.mxu0 0.0
  %389 = vmatprep.subr.mxu0 0.0
  %390 = vmatpush1.msra.mxu0 0.0
  %391 = vmatprep.mubr.f32.mxu0 0.0
  %392 = vmatmul.mubr.f32.gmra.mrb[0].mxu0 %v280
  %v393 = vpop.f32.mrb[0].mxu0
  %v394 = vadd.f32 %v276, %v393
  %v395 = vpop.f32.mrb[0].mxu0
  %396 = vmatprep.mubr.f32.mxu0 0.0
  %397 = vmatmul.mubr.f32.gmra.mrb[0].mxu0 %v283
  %v398 = vpop.f32.mrb[0].mxu0
  %v399 = vadd.f32 %v276, %v398
  %v400 = vpop.f32.mrb[0].mxu0
  %401 = vmatprep.mubr.f32.mxu0 0.0
  %402 = vmatmul.mubr.f32.gmra.mrb[0].mxu0 %v286
  %v403 = vpop.f32.mrb[0].mxu0
  %v404 = vadd.f32 %v276, %v403
  %v405 = vpop.f32.mrb[0].mxu0
  %406 = vmatprep.mubr.f32.mxu0 0.0
  %407 = vmatmul.mubr.f32.gmra.mrb[0].mxu0 %v289
  %v408 = vpop.f32.mrb[0].mxu0
  %v409 = vadd.f32 %v276, %v408
  %v410 = vpop.f32.mrb[0].mxu0
  %411 = vmatprep.mubr.f32.mxu0 0.0
  %412 = vmatmul.mubr.f32.gmra.mrb[0].mxu0 %v292
  %v413 = vpop.f32.mrb[0].mxu0
  %v414 = vadd.f32 %v276, %v413
  %v415 = vpop.f32.mrb[0].mxu0
  %416 = vmatprep.mubr.f32.mxu0 0.0
  %417 = vmatmul.mubr.f32.gmra.mrb[0].mxu0 %v295
  %v418 = vpop.f32.mrb[0].mxu0
  %v419 = vadd.f32 %v276, %v418
  %v420 = vpop.f32.mrb[0].mxu0
  %421 = vmatprep.mubr.f32.mxu0 0.0
  %422 = vmatmul.mubr.f32.gmra.mrb[0].mxu0 %v298
  %v423 = vpop.f32.mrb[0].mxu0
  %v424 = vadd.f32 %v276, %v423
  %v425 = vpop.f32.mrb[0].mxu0
  %426 = vmatprep.mubr.f32.mxu0 0.0
  %427 = vmatmul.mubr.f32.gmra.mrb[0].mxu0 %v301
  %v428 = vpop.f32.mrb[0].mxu0
  %v429 = vadd.f32 %v276, %v428
  %v430 = vpop.f32.mrb[0].mxu0
  %431 = vmatprep.mubr.f32.mxu0 0.0
  %432 = vmatmul.mubr.f32.gmra.mrb[0].mxu0 %v304
  %v433 = vpop.f32.mrb[0].mxu0
  %v434 = vadd.f32 %v276, %v433
  %v435 = vpop.f32.mrb[0].mxu0
  %436 = vmatprep.mubr.f32.mxu0 0.0
  %437 = vmatmul.mubr.f32.gmra.mrb[0].mxu0 %v307
  %v438 = vpop.f32.mrb[0].mxu0
  %v439 = vadd.f32 %v276, %v438
  %v440 = vpop.f32.mrb[0].mxu0
  %441 = vmatprep.mubr.f32.mxu0 0.0
  %442 = vmatmul.mubr.f32.gmra.mrb[0].mxu0 %v310
  %v443 = vpop.f32.mrb[0].mxu0
  %v444 = vadd.f32 %v276, %v443
  %v445 = vpop.f32.mrb[0].mxu0
  %446 = vmatprep.mubr.f32.mxu0 0.0
  %447 = vmatmul.mubr.f32.gmra.mrb[0].mxu0 %v313
  %v448 = vpop.f32.mrb[0].mxu0
  %v449 = vadd.f32 %v276, %v448
  %v450 = vpop.f32.mrb[0].mxu0
  %451 = vmatprep.mubr.f32.mxu0 0.0
  %452 = vmatmul.mubr.f32.gmra.mrb[0].mxu0 %v316
  %v453 = vpop.f32.mrb[0].mxu0
  %v454 = vadd.f32 %v276, %v453
  %v455 = vpop.f32.mrb[0].mxu0
  %456 = vmatprep.mubr.f32.mxu0 0.0
  %457 = vmatmul.mubr.f32.gmra.mrb[0].mxu0 %v319
  %v458 = vpop.f32.mrb[0].mxu0
  %v459 = vadd.f32 %v276, %v458
  %v460 = vpop.f32.mrb[0].mxu0
  %461 = vmatprep.mubr.f32.mxu0 0.0
  %462 = vmatmul.mubr.f32.gmra.mrb[0].mxu0 %v322
  %v463 = vpop.f32.mrb[0].mxu0
  %v464 = vadd.f32 %v276, %v463
  %v465 = vpop.f32.mrb[0].mxu0
  %466 = vmatprep.mubr.f32.mxu0 0.0
  %467 = vmatmul.mubr.f32.gmra.mrb[0].mxu0 %v325
  %v468 = vpop.f32.mrb[0].mxu0
  %v469 = vadd.f32 %v276, %v468
  %v470 = vpop.f32.mrb[0].mxu0
  %471 = vdwg.mxu0
  %v472 = vtanh.pop %v394
  %v473 = vtanh.pop %v399
  %v474 = vtanh.pop %v404
  %v475 = vtanh.pop %v409
  %v476 = vtanh.pop %v414
  %v477 = vtanh.pop %v419
  %v478 = vtanh.pop %v424
  %v479 = vtanh.pop %v429
  %v480 = vtanh.pop %v434
  %v481 = vtanh.pop %v439
  %v482 = vtanh.pop %v444
  %v483 = vtanh.pop %v449
  %v484 = vtanh.pop %v454
  %v485 = vtanh.pop %v459
  %v486 = vtanh.pop %v464
  %v487 = vtanh.pop %v469
  %v488 = vld [vmem:[%s5] sm:$0xff]
  %v489 = vld [vmem:[%s5 + $0x8] sm:$0xff]
  %v490 = vld [vmem:[%s5 + $0x10] sm:$0xff]
  %v491 = vld [vmem:[%s5 + $0x18] sm:$0xff]
  %v492 = vld [vmem:[%s5 + $0x20] sm:$0xff]
  %v493 = vld [vmem:[%s5 + $0x28] sm:$0xff]
  %v494 = vld [vmem:[%s5 + $0x30] sm:$0xff]
  %v495 = vld [vmem:[%s5 + $0x38] sm:$0xff]
  %v496 = vld [vmem:[%s6] sm:$0x1]
  %v498 = vlaneseq
  %v499 = vshrl.u32 %v498, 7
  %v500 = vsub.s32 0, %v499
  %v501 = vrot.slane %v496, %v500
  %v504 = vsel %vm278, %v472, 0
  %v507 = vsel %vm278, %v473, 0
  %v510 = vsel %vm278, %v474, 0
  %v513 = vsel %vm278, %v475, 0
  %v516 = vsel %vm278, %v476, 0
  %v519 = vsel %vm278, %v477, 0
  %v522 = vsel %vm278, %v478, 0
  %v525 = vsel %vm278, %v479, 0
  %v528 = vsel %vm278, %v480, 0
  %v531 = vsel %vm278, %v481, 0
  %v534 = vsel %vm278, %v482, 0
  %v537 = vsel %vm278, %v483, 0
  %v540 = vsel %vm278, %v484, 0
  %v543 = vsel %vm278, %v485, 0
  %v546 = vsel %vm278, %v486, 0
  %v549 = vsel %vm278, %v487, 0
  %551 = vmatprep.subr.mxu0 0.0
  %552 = vmatpush1.msra.mxu0 %v488
  %553 = vmatprep.subr.mxu0 0.0
  %554 = vmatpush1.msra.mxu0 %v489
  %555 = vmatprep.subr.mxu0 0.0
  %556 = vmatpush1.msra.mxu0 %v490
  %557 = vmatprep.subr.mxu0 0.0
  %558 = vmatpush1.msra.mxu0 %v491
  %559 = vmatprep.subr.mxu0 0.0
  %560 = vmatpush1.msra.mxu0 %v492
  %561 = vmatprep.subr.mxu0 0.0
  %562 = vmatpush1.msra.mxu0 %v493
  %563 = vmatprep.subr.mxu0 0.0
  %564 = vmatpush1.msra.mxu0 %v494
  %565 = vmatprep.subr.mxu0 0.0
  %566 = vmatpush1.msra.mxu0 %v495
  %567 = vmatprep.subr.mxu0 0.0
  %568 = vmatpush1.msra.mxu0 0.0
  %569 = vmatprep.subr.mxu0 0.0
  %570 = vmatpush1.msra.mxu0 0.0
  %571 = vmatprep.subr.mxu0 0.0
  %572 = vmatpush1.msra.mxu0 0.0
  %573 = vmatprep.subr.mxu0 0.0
  %574 = vmatpush1.msra.mxu0 0.0
  %575 = vmatprep.subr.mxu0 0.0
  %576 = vmatpush1.msra.mxu0 0.0
  %577 = vmatprep.subr.mxu0 0.0
  %578 = vmatpush1.msra.mxu0 0.0
  %579 = vmatprep.subr.mxu0 0.0
  %580 = vmatpush1.msra.mxu0 0.0
  %581 = vmatprep.subr.mxu0 0.0
  %582 = vmatpush1.msra.mxu0 0.0
  %583 = vmatprep.subr.mxu0 0.0
  %584 = vmatpush1.msra.mxu0 0.0
  %585 = vmatprep.subr.mxu0 0.0
  %586 = vmatpush1.msra.mxu0 0.0
  %587 = vmatprep.subr.mxu0 0.0
  %588 = vmatpush1.msra.mxu0 0.0
  %589 = vmatprep.subr.mxu0 0.0
  %590 = vmatpush1.msra.mxu0 0.0
  %591 = vmatprep.subr.mxu0 0.0
  %592 = vmatpush1.msra.mxu0 0.0
  %593 = vmatprep.subr.mxu0 0.0
  %594 = vmatpush1.msra.mxu0 0.0
  %595 = vmatprep.subr.mxu0 0.0
  %596 = vmatpush1.msra.mxu0 0.0
  %597 = vmatprep.subr.mxu0 0.0
  %598 = vmatpush1.msra.mxu0 0.0
  %599 = vmatprep.subr.mxu0 0.0
  %600 = vmatpush1.msra.mxu0 0.0
  %601 = vmatprep.subr.mxu0 0.0
  %602 = vmatpush1.msra.mxu0 0.0
  %603 = vmatprep.subr.mxu0 0.0
  %604 = vmatpush1.msra.mxu0 0.0
  %605 = vmatprep.subr.mxu0 0.0
  %606 = vmatpush1.msra.mxu0 0.0
  %607 = vmatprep.subr.mxu0 0.0
  %608 = vmatpush1.msra.mxu0 0.0
  %609 = vmatprep.subr.mxu0 0.0
  %610 = vmatpush1.msra.mxu0 0.0
  %611 = vmatprep.subr.mxu0 0.0
  %612 = vmatpush1.msra.mxu0 0.0
  %613 = vmatprep.subr.mxu0 0.0
  %614 = vmatpush1.msra.mxu0 0.0
  %615 = vmatprep.mubr.f32.mxu0 0.0
  %616 = vmatmul.mubr.f32.gmra.mrb[0].mxu0 %v504
  %v617 = vpop.f32.mrb[0].mxu0
  %v618 = vadd.f32 %v501, %v617
  %v619 = vpop.f32.mrb[0].mxu0
  %620 = vmatprep.mubr.f32.mxu0 0.0
  %621 = vmatmul.mubr.f32.gmra.mrb[0].mxu0 %v507
  %v622 = vpop.f32.mrb[0].mxu0
  %v623 = vadd.f32 %v501, %v622
  %v624 = vpop.f32.mrb[0].mxu0
  %625 = vmatprep.mubr.f32.mxu0 0.0
  %626 = vmatmul.mubr.f32.gmra.mrb[0].mxu0 %v510
  %v627 = vpop.f32.mrb[0].mxu0
  %v628 = vadd.f32 %v501, %v627
  %v629 = vpop.f32.mrb[0].mxu0
  %630 = vmatprep.mubr.f32.mxu0 0.0
  %631 = vmatmul.mubr.f32.gmra.mrb[0].mxu0 %v513
  %v632 = vpop.f32.mrb[0].mxu0
  %v633 = vadd.f32 %v501, %v632
  %v634 = vpop.f32.mrb[0].mxu0
  %635 = vmatprep.mubr.f32.mxu0 0.0
  %636 = vmatmul.mubr.f32.gmra.mrb[0].mxu0 %v516
  %v637 = vpop.f32.mrb[0].mxu0
  %v638 = vadd.f32 %v501, %v637
  %v639 = vpop.f32.mrb[0].mxu0
  %640 = vmatprep.mubr.f32.mxu0 0.0
  %641 = vmatmul.mubr.f32.gmra.mrb[0].mxu0 %v519
  %v642 = vpop.f32.mrb[0].mxu0
  %v643 = vadd.f32 %v501, %v642
  %v644 = vpop.f32.mrb[0].mxu0
  %645 = vmatprep.mubr.f32.mxu0 0.0
  %646 = vmatmul.mubr.f32.gmra.mrb[0].mxu0 %v522
  %v647 = vpop.f32.mrb[0].mxu0
  %v648 = vadd.f32 %v501, %v647
  %v649 = vpop.f32.mrb[0].mxu0
  %650 = vmatprep.mubr.f32.mxu0 0.0
  %651 = vmatmul.mubr.f32.gmra.mrb[0].mxu0 %v525
  %v652 = vpop.f32.mrb[0].mxu0
  %v653 = vadd.f32 %v501, %v652
  %v654 = vpop.f32.mrb[0].mxu0
  %655 = vmatprep.mubr.f32.mxu0 0.0
  %656 = vmatmul.mubr.f32.gmra.mrb[0].mxu0 %v528
  %v657 = vpop.f32.mrb[0].mxu0
  %v658 = vadd.f32 %v501, %v657
  %v659 = vpop.f32.mrb[0].mxu0
  %660 = vmatprep.mubr.f32.mxu0 0.0
  %661 = vmatmul.mubr.f32.gmra.mrb[0].mxu0 %v531
  %v662 = vpop.f32.mrb[0].mxu0
  %v663 = vadd.f32 %v501, %v662
  %v664 = vpop.f32.mrb[0].mxu0
  %665 = vmatprep.mubr.f32.mxu0 0.0
  %666 = vmatmul.mubr.f32.gmra.mrb[0].mxu0 %v534
  %v667 = vpop.f32.mrb[0].mxu0
  %v668 = vadd.f32 %v501, %v667
  %v669 = vpop.f32.mrb[0].mxu0
  %670 = vmatprep.mubr.f32.mxu0 0.0
  %671 = vmatmul.mubr.f32.gmra.mrb[0].mxu0 %v537
  %v672 = vpop.f32.mrb[0].mxu0
  %v673 = vadd.f32 %v501, %v672
  %v674 = vpop.f32.mrb[0].mxu0
  %675 = vmatprep.mubr.f32.mxu0 0.0
  %676 = vmatmul.mubr.f32.gmra.mrb[0].mxu0 %v540
  %v677 = vpop.f32.mrb[0].mxu0
  %v678 = vadd.f32 %v501, %v677
  %v679 = vpop.f32.mrb[0].mxu0
  %680 = vmatprep.mubr.f32.mxu0 0.0
  %681 = vmatmul.mubr.f32.gmra.mrb[0].mxu0 %v543
  %v682 = vpop.f32.mrb[0].mxu0
  %v683 = vadd.f32 %v501, %v682
  %v684 = vpop.f32.mrb[0].mxu0
  %685 = vmatprep.mubr.f32.mxu0 0.0
  %686 = vmatmul.mubr.f32.gmra.mrb[0].mxu0 %v546
  %v687 = vpop.f32.mrb[0].mxu0
  %v688 = vadd.f32 %v501, %v687
  %v689 = vpop.f32.mrb[0].mxu0
  %690 = vmatprep.mubr.f32.mxu0 0.0
  %691 = vmatmul.mubr.f32.gmra.mrb[0].mxu0 %v549
  %v692 = vpop.f32.mrb[0].mxu0
  %v693 = vadd.f32 %v501, %v692
  %v694 = vpop.f32.mrb[0].mxu0
  %695 = vdwg.mxu0
  %696 = vxpose.xlu0.b32.start [1/16] %v618, 128
  %697 = vxpose.xlu0.b32.cont [2/16] %v623, 128
  %698 = vxpose.xlu0.b32.cont [3/16] %v628, 128
  %699 = vxpose.xlu0.b32.cont [4/16] %v633, 128
  %700 = vxpose.xlu0.b32.cont [5/16] %v638, 128
  %701 = vxpose.xlu0.b32.cont [6/16] %v643, 128
  %702 = vxpose.xlu0.b32.cont [7/16] %v648, 128
  %703 = vxpose.xlu0.b32.cont [8/16] %v653, 128
  %704 = vxpose.xlu0.b32.cont [9/16] %v658, 128
  %705 = vxpose.xlu0.b32.cont [10/16] %v663, 128
  %706 = vxpose.xlu0.b32.cont [11/16] %v668, 128
  %707 = vxpose.xlu0.b32.cont [12/16] %v673, 128
  %708 = vxpose.xlu0.b32.cont [13/16] %v678, 128
  %709 = vxpose.xlu0.b32.cont [14/16] %v683, 128
  %710 = vxpose.xlu0.b32.cont [15/16] %v688, 128
  %711 = vxpose.xlu0.b32.end [16/16] %v693, 128
  %v712 = vpop.trf.xlu0
  %v713 = vpop.trf.xlu0
  %v714 = vpop.trf.xlu0
  %v715 = vpop.trf.xlu0
  %v716 = vpop.trf.xlu0
  %v717 = vpop.trf.xlu0
  %v718 = vpop.trf.xlu0
  %v719 = vpop.trf.xlu0
  %v720 = vpop.trf.xlu0
  %v721 = vpop.trf.xlu0
  %v722 = vpop.trf.xlu0
  %v723 = vpop.trf.xlu0
  %v724 = vpop.trf.xlu0
  %v725 = vpop.trf.xlu0
  %v726 = vpop.trf.xlu0
  %v727 = vpop.trf.xlu0
  %v728 = vmax.f32 %v712, 0.0
  %v729 = vand.u32 2147483647, %v712
  %v730 = vsub.f32 0.0, %v729
  %v731 = vmul.f32 %v730, 1.442695
  %v732 = vpow.pop %v731
  %v733 = vadd.f32 %v732, 1.0
  %v734 = vlog2.pop %v733
  %v735 = vmul.f32 %v734, 0.6931472
  %v736 = vmul.f32 -0.5, %v732
  %v737 = vadd.f32 %v736, 1.0
  %v738 = vmul.f32 %v737, %v732
  %v739 = vand.u32 2147483647, %v732
  %vm740 = vcmp.lt.f32.partialorder %v739, 0.0004427343
  %v741 = vsel %vm740, %v738, %v735
  %v742 = vadd.f32 %v728, %v741
  %v743 = vlaneseq
  %v744 = vshrl.u32 %v743, 7
  %vm745 = vcmp.ge.s32.totalorder %v744, 4
  %v746 = vsel %vm745, %v742, %v712
  %747 = vst [vmem:[%s7] sm:$0xff] %v746
  // Predicated region
  $region30: #{policy_net_forward.1} parent=0 // pred_check
    _
  $region31: #{policy_net_forward.1} parent=0 // pred_check_branch
    %749 = sbr.rel (0) target = $region33
  $region32: #{policy_net_forward.1} parent=0 // pred_region
    _
  $region33: #{policy_net_forward.1} parent=0 // pred_fallthru
    _
  // Predicated region
  $region34: #{policy_net_forward.1} parent=0 // pred_check
    _
  $region35: #{policy_net_forward.1} parent=0 // pred_check_branch
    %751 = sbr.rel (0) target = $region37
  $region36: #{policy_net_forward.1} parent=0 // pred_region
    _
  $region37: #{policy_net_forward.1} parent=0 // pred_fallthru
    _

</llo_original>
